<compile_context>
chip_gen: v7x
topology: tpu7x:2x2x1
jax: 0.10.0
libtpu: 0.0.40
codegen_flags: <defaults>
</compile_context>

<pallas_src>
import numpy as np
import jax
import jax.numpy as jnp
from jax.experimental import pallas as pl
from jax.experimental.pallas import tpu as pltpu

TAU = 12
BETA = 0.5


def _round_up(x, m):
    return ((x + m - 1) // m) * m


def _cdiv(a, b):
    return (a + b - 1) // b


def _vmem_limit(estimate_bytes):
    # generous headroom above the estimate; clamp so it is valid on every generation
    return int(min(max(estimate_bytes + (8 << 20), 32 << 20), 96 << 20))


# ---------------------------------------------------------------------------
# Kernel 1: fused (fc0 + GRU input-gate projection) as one matmul.
# ---------------------------------------------------------------------------
def _input_gates_kernel(x_ref, w_ref, b_ref, o_ref):
    # bf16 operands, f32 accumulation, bf16 store (rtol/atol 2e-2 budget).
    x = x_ref[...].astype(jnp.bfloat16)
    acc = jnp.dot(x, w_ref[...], preferred_element_type=jnp.float32) + b_ref[...]
    o_ref[...] = acc.astype(o_ref.dtype)


def input_gates_forward(x2d, w_comb_bf16, b_comb, *, tm=512):
    # tm: raise to 1024 on v5e/v6e (128 MiB VMEM) for large Din; 512 is v7x-safe.
    n, din = x2d.shape
    gpad = w_comb_bf16.shape[1]
    tm = min(tm, _round_up(n, 16))
    est = 2 * 2 * (tm * din * 4 + tm * gpad * 2) + din * gpad * 2
    return pl.pallas_call(
        _input_gates_kernel,
        out_shape=jax.ShapeDtypeStruct((n, gpad), jnp.bfloat16),
        grid=(_cdiv(n, tm),),
        in_specs=[
            pl.BlockSpec((tm, din), lambda i: (i, 0)),
            pl.BlockSpec((din, gpad), lambda i: (0, 0)),
            pl.BlockSpec((1, gpad), lambda i: (0, 0)),
        ],
        out_specs=pl.BlockSpec((tm, gpad), lambda i: (i, 0)),
        compiler_params=pltpu.CompilerParams(
            dimension_semantics=("parallel",),
            vmem_limit_bytes=_vmem_limit(est),
        ),
    )(x2d, w_comb_bf16, b_comb)


def _fold_input_weights(params, gpad):
    """W_comb = W0^T @ Wih^T (Din,3H), b_comb = b0 @ Wih^T + b_ih; pad to gpad lanes."""
    w0t, b0 = params["w0t"], params["b0"]
    wihT, bih = params["wihT"], params["bih"]
    g = wihT.shape[1]
    din = w0t.shape[0]
    w_comb = jnp.dot(w0t, wihT)                 # (Din, 3H)  exact fold of fc0 + input proj
    b_comb = jnp.dot(b0, wihT) + bih            # (1, 3H)
    w_p = jnp.zeros((din, gpad), jnp.float32).at[:, :g].set(w_comb)
    b_p = jnp.zeros((1, gpad), jnp.float32).at[:, :g].set(b_comb)
    return w_p.astype(jnp.bfloat16), b_p


# ---------------------------------------------------------------------------
# TP window helpers: time along axis 0 (sublanes), static shifts via concat.
# ---------------------------------------------------------------------------
def _shift_back(a, s, fill):
    """out[t] = a[t - s] if t >= s else fill."""
    t = a.shape[0]
    if s >= t:
        return jnp.full(a.shape, fill, a.dtype)
    pad = jnp.full((s,) + a.shape[1:], fill, a.dtype)
    return jnp.concatenate([pad, a[: t - s]], axis=0)


def _shift_fwd(a, s, fill):
    """out[t] = a[t + s] if t + s < T else fill."""
    t = a.shape[0]
    if s >= t:
        return jnp.full(a.shape, fill, a.dtype)
    pad = jnp.full((s,) + a.shape[1:], fill, a.dtype)
    return jnp.concatenate([a[s:], pad], axis=0)


def _win_min_causal(q, tau):
    """min over [t - tau + 1, t] (clipped at 0); doubling scheme, ~4 shifts for tau=12."""
    inf = jnp.float32(jnp.inf)
    pieces = {1: q}
    a, size = q, 1
    while size * 2 <= tau:
        a = jnp.minimum(a, _shift_back(a, size, inf))
        size *= 2
        pieces[size] = a
    res, covered, rem = a, size, tau - size
    while rem > 0:
        s = 1 << (rem.bit_length() - 1)
        res = jnp.minimum(res, _shift_back(pieces[s], covered, inf))
        covered += s
        rem -= s
    return res


def _win_sum_fwd(a0, tau):
    """sum over [t, t + tau - 1] (clipped at T); a0 must already be 0 at invalid rows."""
    pieces = {1: a0}
    a, size = a0, 1
    while size * 2 <= tau:
        a = a + _shift_fwd(a, size, 0.0)
        size *= 2
        pieces[size] = a
    res, covered, rem = a, size, tau - size
    while rem > 0:
        s = 1 << (rem.bit_length() - 1)
        res = res + _shift_fwd(pieces[s], covered, 0.0)
        covered += s
        rem -= s
    return res


# ---------------------------------------------------------------------------
# Kernel 2: streaming GRU recurrence (time-chunk grid) + deferred q head +
# TP temporal pooling + per-sequence mean.
# PyTorch GRU cell (gate order r,z,n), h0 = 0:
#   r = sig(xg_r + Whr h + bhr), z = sig(xg_z + Whz h + bhz)
#   n = tanh(xg_n + r * (Whn h + bhn)),  h' = (1-z) n + z h
# xg_* already contains W_i* x + b_i* (kernel 1).
# ---------------------------------------------------------------------------
def _gru_q_tp_kernel(xg_ref, whh_ref, bhh_ref, wq_ref, bq_ref, len_ref,
                     o_ref, h_s, hseq, q_acc):
    Tc = xg_ref.shape[0]
    H = whh_ref.shape[0]
    Tpad, B = q_acc.shape
    tc = pl.program_id(0)

    @pl.when(tc == 0)
    def _():
        h_s[...] = jnp.zeros_like(h_s)

    whh = whh_ref[...]                                   # (H, 3H) bf16
    bhh = bhh_ref[...]                                   # (1, 3H) f32

    def step(tt, h):
        xg = xg_ref[tt].astype(jnp.float32)              # (B, gpad), bf16 -> f32
        hg = jnp.dot(h.astype(jnp.bfloat16), whh,
                     preferred_element_type=jnp.float32) + bhh
        r = jax.nn.sigmoid(xg[:, 0:H] + hg[:, 0:H])
        z = jax.nn.sigmoid(xg[:, H:2 * H] + hg[:, H:2 * H])
        n = jnp.tanh(xg[:, 2 * H:3 * H] + r * hg[:, 2 * H:3 * H])
        h_new = (1.0 - z) * n + z * h
        hseq[tt] = h_new                                 # store only; off the dep chain
        return h_new

    # sequential recurrence over this chunk; unroll=2 gives the scheduler cross-step slack
    h_s[...] = jax.lax.fori_loop(0, Tc, step, h_s[...], unroll=2)

    # deferred q head: one VPU reduce for the whole chunk (not per step)
    q_chunk = jnp.sum(hseq[...] * wq_ref[...], axis=-1) + bq_ref[...]    # (Tc, B)
    start = pl.multiple_of(tc * Tc, 8)
    q_acc[pl.ds(start, Tc), :] = q_chunk

    @pl.when(tc == pl.num_programs(0) - 1)
    def _():
        q = q_acc[...]                                   # (Tpad, B), time on sublanes
        lens = len_ref[...]                              # (1, B) int32
        col = jax.lax.broadcasted_iota(jnp.int32, (Tpad, B), 0)
        valid = col < lens
        inf = jnp.float32(jnp.inf)

        # l[t] = min over [t-(tau-1), t]  (matches the -inf front-pad of the max_pool)
        lmin = _win_min_causal(jnp.where(valid, q, inf), TAU)

        # m/n windows over [t, t+tau-1]; the 10000-pad in the reference contributes
        # exactly 0 (exp(-10000) == 0), i.e. restrict the sums to valid positions.
        e = jnp.where(valid, jnp.exp(-q), 0.0)           # exp computed once, reused
        g = jnp.where(valid, q, 0.0) * e
        num = _win_sum_fwd(g, TAU)
        den = _win_sum_fwd(e, TAU)
        den = jnp.where(den > 0.0, den, 1.0)             # 0/0 guard (exp underflow)

        tp = BETA * (num / den) + (1.0 - BETA) * lmin
        tp = jnp.where(valid, tp, 0.0)
        lens_f = jnp.maximum(lens, 1).astype(jnp.float32)
        o_ref[...] = jnp.sum(tp, axis=0, keepdims=True) / lens_f


def gru_q_tp_forward(xg_tm, whh_bf16, bhh, wq, bq, lens_row, *, t_chunk=256):
    T, B, gpad = xg_tm.shape
    H = whh_bf16.shape[0]
    Tc = _round_up(min(t_chunk, _round_up(T, 8)), 8)
    n_chunks = _cdiv(T, Tc)
    Tpad = n_chunks * Tc
    if Tpad != T:
        # zero-padded trailing steps are harmless: their q values are masked by `lens`
        xg_tm = jnp.pad(xg_tm, ((0, Tpad - T), (0, 0), (0, 0)))

    est = (2 * 2 * Tc * B * gpad * 2                       # double-buffered xg chunks
           + Tc * _round_up(max(B, 8), 8) * _round_up(H, 128) * 4   # hseq scratch (padded)
           + Tpad * _round_up(B, 128) * 4)                 # q_acc scratch (padded lanes)
    return pl.pallas_call(
        _gru_q_tp_kernel,
        out_shape=jax.ShapeDtypeStruct((1, B), jnp.float32),
        grid=(n_chunks,),
        in_specs=[
            pl.BlockSpec((Tc, B, gpad), lambda t: (t, 0, 0)),
            pl.BlockSpec((H, 3 * H), lambda t: (0, 0)),
            pl.BlockSpec((1, 3 * H), lambda t: (0, 0)),
            pl.BlockSpec((1, H), lambda t: (0, 0)),
            pl.BlockSpec((1, 1), lambda t: (0, 0)),
            pl.BlockSpec((1, B), lambda t: (0, 0)),
        ],
        out_specs=pl.BlockSpec((1, B), lambda t: (0, 0)),
        scratch_shapes=[
            pltpu.VMEM((B, H), jnp.float32),               # h carry across chunks
            pltpu.VMEM((Tc, B, H), jnp.float32),           # per-chunk hidden states
            pltpu.VMEM((Tpad, B), jnp.float32),            # full-sequence q
        ],
        compiler_params=pltpu.CompilerParams(
            dimension_semantics=("arbitrary",),            # sequential time recurrence
            vmem_limit_bytes=_vmem_limit(est),
        ),
    )(xg_tm, whh_bf16, bhh, wq, bq, lens_row)


# ---------------------------------------------------------------------------
# Full VSFA forward (glue: cheap reshapes / a small bf16 transpose in JAX).
# ---------------------------------------------------------------------------
def vsfa_forward(x, input_length, params, *, tm=512, t_chunk=256):
    B, T, Din = x.shape
    H = params["whh"].shape[0]
    gpad = _round_up(3 * H, 128)

    w_comb, b_comb = _fold_input_weights(params, gpad)
    xg2d = input_gates_forward(x.reshape(B * T, Din), w_comb, b_comb, tm=tm)  # (B*T, gpad) bf16

    # small bf16 (128-lane) relayout to time-major so kernel 2 only indexes the
    # leading (time) axis; negligible vs. reading x.
    xg_tm = jnp.transpose(xg2d.reshape(B, T, gpad), (1, 0, 2))                # (T, B, gpad)

    lens_row = jnp.maximum(input_length.astype(jnp.int32), 0).reshape(1, B)
    whh_bf16 = params["whh"].astype(jnp.bfloat16)
    score = gru_q_tp_forward(xg_tm, whh_bf16, params["bhh"], params["wq"],
                             params["bq"], lens_row, t_chunk=t_chunk)          # (1, B)
    return score[0].astype(input_length.dtype)       # torch.zeros_like(input_length) dtype


# ---------------------------------------------------------------------------
# Pure JAX/numpy reference (mirrors the PyTorch forward) for verification.
# ---------------------------------------------------------------------------
def vsfa_reference(x, lengths, p):
    B, T, _ = x.shape
    H = p["whh"].shape[0]
    feat = x @ p["w0t"] + p["b0"][0]
    xg = feat @ p["wihT"] + p["bih"][0]                  # (B, T, 3H)
    h = jnp.zeros((B, H), jnp.float32)
    qs = []
    for t in range(T):
        g = xg[:, t, :]
        hg = h @ p["whh"] + p["bhh"][0]
        r = jax.nn.sigmoid(g[:, :H] + hg[:, :H])
        z = jax.nn.sigmoid(g[:, H:2 * H] + hg[:, H:2 * H])
        n = jnp.tanh(g[:, 2 * H:] + r * hg[:, 2 * H:])
        h = (1.0 - z) * n + z * h
        qs.append(jnp.sum(h * p["wq"], axis=1) + p["bq"][0, 0])
    q = np.asarray(jnp.stack(qs, axis=1))                # (B, T)

    scores = []
    for b in range(B):
        L = int(lengths[b])
        qi = q[b, :L]
        tp = []
        for t in range(L):
            lval = qi[max(0, t - (TAU - 1)):t + 1].min()
            w = qi[t:min(t + TAU, L)]
            mval = np.sum(w * np.exp(-w)) / np.sum(np.exp(-w))
            tp.append(BETA * mval + (1.0 - BETA) * lval)
        scores.append(np.mean(tp))
    return np.array(scores, dtype=np.float32)


# ---------------------------------------------------------------------------
def make_params(key, input_size, reduced_size, hidden_size):
    H = hidden_size
    ks = jax.random.split(key, 8)
    s = 0.05
    # nn.Linear(input_size, reduced_size)
    w_fc0 = jax.random.normal(ks[0], (reduced_size, input_size), jnp.float32) * s
    b_fc0 = jax.random.normal(ks[1], (reduced_size,), jnp.float32) * s
    # nn.GRU(reduced_size, hidden_size): weight_ih (3H,R), weight_hh (3H,H), gates [r,z,n]
    w_ih = jax.random.normal(ks[2], (3 * H, reduced_size), jnp.float32) * s
    w_hh = jax.random.normal(ks[3], (3 * H, H), jnp.float32) * s
    b_ih = jax.random.normal(ks[4], (3 * H,), jnp.float32) * s
    b_hh = jax.random.normal(ks[5], (3 * H,), jnp.float32) * s
    # nn.Linear(hidden_size, 1)
    w_q = jax.random.normal(ks[6], (1, H), jnp.float32) * s
    b_q = jax.random.normal(ks[7], (1,), jnp.float32) * s

    # b_hh must stay separate (b_hn is multiplied by the reset gate); only b_ih
    # is folded into the precomputed input projection.
    return {
        "w0t": w_fc0.T,                           # (Din, R)
        "b0": b_fc0.reshape(1, reduced_size),     # (1, R)
        "wihT": w_ih.T,                           # (R, 3H), columns [r|z|n]
        "bih": b_ih.reshape(1, 3 * H),            # (1, 3H)
        "whh": w_hh.T,                            # (H, 3H), columns [r|z|n]
        "bhh": b_hh.reshape(1, 3 * H),            # (1, 3H)
        "wq": w_q,                                # (1, H)
        "bq": b_q.reshape(1, 1),                  # (1, 1)
    }


if __name__ == "__main__":
    # Small shapes: batch=2, seq=16, input_size=256, reduced_size=128, hidden=32
    B, T, Din, R, H = 2, 16, 256, 128, 32
    key = jax.random.PRNGKey(0)
    k_par, k_x = jax.random.split(key)
    params = make_params(k_par, Din, R, H)

    x = jax.random.normal(k_x, (B, T, Din), jnp.float32) * 0.5
    input_length = jnp.array([float(T), 11.0], dtype=jnp.float32)

    score = vsfa_forward(x, input_length, params)
    score = jax.block_until_ready(score)

    ref = vsfa_reference(x, np.asarray(input_length), params)
    # bf16 is used for the fused input projection, the stored gates and the recurrent
    # matmul (f32 accumulation everywhere); tolerance sized accordingly.
    np.testing.assert_allclose(np.asarray(score), ref, rtol=2e-2, atol=2e-2)

    print("KERNEL_OK")
</pallas_src>

<mosaic_0001>
module attributes {stable_mosaic.version = 11 : i64} {
  func.func @_input_gates_kernel(%arg0: i32, %arg1: memref<32x256xf32, #tpu.memory_space<vmem>>, %arg2: memref<256x128xbf16, #tpu.memory_space<vmem>>, %arg3: memref<1x128xf32, #tpu.memory_space<vmem>>, %arg4: memref<32x128xbf16, #tpu.memory_space<vmem>>) attributes {dimension_semantics = [#tpu.dimension_semantics<parallel>], iteration_bounds = array<i64: 1>, scalar_prefetch = 0 : i64, scratch_operands = 0 : i64, tpu.core_type = #tpu.core_type<tc>, window_params = [{transform_indices = @transform_0, window_bounds = array<i64: 32, 256>}, {pipeline_mode = #tpu.pipeline_mode<synchronous>, transform_indices = @transform_1, window_bounds = array<i64: 256, 128>}, {pipeline_mode = #tpu.pipeline_mode<synchronous>, transform_indices = @transform_2, window_bounds = array<i64: 1, 128>}, {transform_indices = @transform_3, window_bounds = array<i64: 32, 128>}]} {
    %c0 = arith.constant 0 : index
    %c0_0 = arith.constant 0 : index
    %0 = vector.load %arg1[%c0, %c0_0] : memref<32x256xf32, #tpu.memory_space<vmem>>, vector<32x256xf32>
    %1 = arith.truncf %0 : vector<32x256xf32> to vector<32x256xbf16>
    %c0_1 = arith.constant 0 : index
    %c0_2 = arith.constant 0 : index
    %2 = vector.load %arg2[%c0_1, %c0_2] : memref<256x128xbf16, #tpu.memory_space<vmem>>, vector<256x128xbf16>
    %cst = arith.constant dense<0.000000e+00> : vector<32x128xf32>
    %3 = tpu.matmul %1, %2, %cst {dimension_numbers = #tpu.dot_dimension_numbers<[1], [0], [0], [1], [0, 0, 1, 1], [], []>} : vector<32x256xbf16>, vector<256x128xbf16>, vector<32x128xf32> -> vector<32x128xf32>
    %c0_3 = arith.constant 0 : index
    %c0_4 = arith.constant 0 : index
    %4 = vector.load %arg3[%c0_3, %c0_4] : memref<1x128xf32, #tpu.memory_space<vmem>>, vector<1x128xf32>
    %5 = vector.broadcast %4 : vector<1x128xf32> to vector<32x128xf32>
    %6 = arith.addf %3, %5 : vector<32x128xf32>
    %7 = arith.truncf %6 : vector<32x128xf32> to vector<32x128xbf16>
    %c0_5 = arith.constant 0 : index
    %c0_6 = arith.constant 0 : index
    %8 = vector.load %arg4[%c0_5, %c0_6] : memref<32x128xbf16, #tpu.memory_space<vmem>>, vector<32x128xbf16>
    tpu.vector_store %arg4[%c0_5, %c0_6], %7 {strides = array<i32>} : memref<32x128xbf16, #tpu.memory_space<vmem>>, vector<32x128xbf16>,
    return
  }
  func.func @transform_0(%arg0: i32) -> (i32, i32) {
    %c0_i32 = arith.constant 0 : i32
    %c0_i32_0 = arith.constant 0 : i32
    return %arg0, %c0_i32 : i32, i32
  }
  func.func @transform_1(%arg0: i32) -> (i32, i32) {
    %c0_i32 = arith.constant 0 : i32
    %c0_i32_0 = arith.constant 0 : i32
    %c0_i32_1 = arith.constant 0 : i32
    return %c0_i32, %c0_i32_0 : i32, i32
  }
  func.func @transform_2(%arg0: i32) -> (i32, i32) {
    %c0_i32 = arith.constant 0 : i32
    %c0_i32_0 = arith.constant 0 : i32
    %c0_i32_1 = arith.constant 0 : i32
    return %c0_i32, %c0_i32_0 : i32, i32
  }
  func.func @transform_3(%arg0: i32) -> (i32, i32) {
    %c0_i32 = arith.constant 0 : i32
    %c0_i32_0 = arith.constant 0 : i32
    return %arg0, %c0_i32 : i32, i32
  }
}

</mosaic_0001>

<llo_original>
// kernel: tpu_custom_call.1
$region0: #{tpu_custom_call.1}
  #allocation0 [shape = 'u32[]', space=smem, size = 0x4, offset = 0x4, fixed_abs, tag = 'smem constant byte address 0x4 - core index']
  #allocation1 [shape = 'u32[144,128]{1,0:T(1,128)}', space=vmem, size = 0x12000, scoped, tag = 'internal scratch']
  %s0 = inlined_call_operand.hbm [shape: f32[32,256], index: 0, kind: input, shape index: {}]
  %s1 = inlined_call_operand.hbm [shape: bf16[256,128], index: 1, kind: input, shape index: {}]
  %s2 = inlined_call_operand.vmem [shape: f32[1,128], index: 2, kind: input, shape index: {}]
  %s3 = inlined_call_operand.hbm [shape: bf16[32,128], index: 3, kind: output, shape index: {}]
  %s4 = sld [smem:[#allocation0]]
  $region30: #{tpu_custom_call.1} parent=0
    _
  %s6 = ssub.s32 1, %s4
  %s7 = scalar_select 0, %s6, %s4
  $region1: #{tpu_custom_call.1} parent=0
    #allocation2 [shape = 'u8[32768]{0}', space=vmem, size = 0x8000, scoped, tag = 'input window, operand 0, single buffered']
    #allocation3 [shape = 's32[1]{0}', space=sflag, size = 0x4, scoped, tag = 'scoped memory for tpu_custom_call.1']
    #allocation4 [shape = 's32[1]{0}', space=sflag, size = 0x4, scoped, tag = 'scoped memory for tpu_custom_call.1']
    #allocation5 [shape = 'u8[65536]{0}', space=vmem, size = 0x10000, scoped, tag = 'input window, operand 1, single buffered']
    #allocation6 [shape = 's32[1]{0}', space=sflag, size = 0x4, scoped, tag = 'scoped memory for tpu_custom_call.1']
    #allocation7 [shape = 'u8[8192]{0}', space=vmem, size = 0x2000, scoped, tag = 'output window, operand 0, single buffered']
    %8 = vsyncpa [#allocation3], 0
    %9 = vsyncpa [#allocation6], 0
    %10 = vsyncpa [#allocation4], 0
    // Predicated region
    $region2: #{tpu_custom_call.1} parent=1 // pred_check
      _
    $region3: #{tpu_custom_call.1} parent=1 // pred_check_branch
      %12 = sbr.rel (0) target = $region5
    $region4: #{tpu_custom_call.1} parent=1 // pred_region
      %s14 = ssub.s32 1024, 1024
      %15 = vsyncadd [#allocation3], %s14
      %s16 = sshll.u32 [#allocation2], 4
      %s17 = int_to_ptr.vmem [resolvable:$true] %s16
      %22 = dma.hbm_to_vmem [thread:$0]  %s0, 1024, %s17, [#allocation3], 256, 256, 16
    $region5: #{tpu_custom_call.1} parent=1 // pred_fallthru
      _
    // Predicated region
    $region6: #{tpu_custom_call.1} parent=1 // pred_check
      _
    $region7: #{tpu_custom_call.1} parent=1 // pred_check_branch
      %24 = sbr.rel (0) target = $region9
    $region8: #{tpu_custom_call.1} parent=1 // pred_region
      %s26 = ssub.s32 2048, 2048
      %27 = vsyncadd [#allocation6], %s26
      %s28 = sshll.u32 [#allocation5], 4
      %s29 = int_to_ptr.vmem [resolvable:$true] %s28
      %34 = dma.hbm_to_vmem [thread:$0]  %s1, 2048, %s29, [#allocation6], 64, 64, 4
    $region9: #{tpu_custom_call.1} parent=1 // pred_fallthru
      _
    // Predicated region
    $region10: #{tpu_custom_call.1} parent=1 // pred_check
      _
    $region11: #{tpu_custom_call.1} parent=1 // pred_check_branch
      %36 = sbr.rel (0) target = $region13
    $region12: #{tpu_custom_call.1} parent=1 // pred_region
      _
    $region13: #{tpu_custom_call.1} parent=1 // pred_fallthru
      _
    // Predicated region
    $region14: #{tpu_custom_call.1} parent=1 // pred_check
      _
    $region15: #{tpu_custom_call.1} parent=1 // pred_check_branch
      %38 = sbr.rel (0) target = $region17
    $region16: #{tpu_custom_call.1} parent=1 // pred_region
      %39 = dma.done [#allocation3], 1024
    $region17: #{tpu_custom_call.1} parent=1 // pred_fallthru
      _
    // Predicated region
    $region18: #{tpu_custom_call.1} parent=1 // pred_check
      _
    $region19: #{tpu_custom_call.1} parent=1 // pred_check_branch
      %41 = sbr.rel (0) target = $region21
    $region20: #{tpu_custom_call.1} parent=1 // pred_region
      %42 = dma.done [#allocation6], 2048
    $region21: #{tpu_custom_call.1} parent=1 // pred_fallthru
      _
    %v44 = vld [vmem:[#allocation2] sm:$0xff]
    %v45 = vld [vmem:[#allocation2 + $0x8] sm:$0xff]
    %v46 = vld [vmem:[#allocation2 + $0x10] sm:$0xff]
    %v47 = vld [vmem:[#allocation2 + $0x18] sm:$0xff]
    %v48 = vld [vmem:[#allocation2 + $0x20] sm:$0xff]
    %v49 = vld [vmem:[#allocation2 + $0x28] sm:$0xff]
    %v50 = vld [vmem:[#allocation2 + $0x30] sm:$0xff]
    %v51 = vld [vmem:[#allocation2 + $0x38] sm:$0xff]
    %v52 = vpack.c.bf16 %v46, %v44
    %v53 = vpack.c.bf16 %v47, %v45
    %v54 = vpack.c.bf16 %v50, %v48
    %v55 = vpack.c.bf16 %v51, %v49
    %v56 = vld [vmem:[#allocation5] sm:$0xf]
    %v57 = vld [vmem:[#allocation5 + $0x4] sm:$0xf]
    %v58 = vld [vmem:[#allocation5 + $0x8] sm:$0xf]
    %v59 = vld [vmem:[#allocation5 + $0xc] sm:$0xf]
    %v60 = vld [vmem:[#allocation5 + $0x10] sm:$0xf]
    %v61 = vld [vmem:[#allocation5 + $0x14] sm:$0xf]
    %v62 = vld [vmem:[#allocation5 + $0x18] sm:$0xf]
    %v63 = vld [vmem:[#allocation5 + $0x1c] sm:$0xf]
    %v64 = vld [vmem:[#allocation5 + $0x20] sm:$0xf]
    %v65 = vld [vmem:[#allocation5 + $0x24] sm:$0xf]
    %v66 = vld [vmem:[#allocation5 + $0x28] sm:$0xf]
    %v67 = vld [vmem:[#allocation5 + $0x2c] sm:$0xf]
    %v68 = vld [vmem:[#allocation5 + $0x30] sm:$0xf]
    %v69 = vld [vmem:[#allocation5 + $0x34] sm:$0xf]
    %v70 = vld [vmem:[#allocation5 + $0x38] sm:$0xf]
    %v71 = vld [vmem:[#allocation5 + $0x3c] sm:$0xf]
    %v72 = vld [vmem:[#allocation5 + $0x40] sm:$0xf]
    %v73 = vld [vmem:[#allocation5 + $0x44] sm:$0xf]
    %v74 = vld [vmem:[#allocation5 + $0x48] sm:$0xf]
    %v75 = vld [vmem:[#allocation5 + $0x4c] sm:$0xf]
    %v76 = vld [vmem:[#allocation5 + $0x50] sm:$0xf]
    %v77 = vld [vmem:[#allocation5 + $0x54] sm:$0xf]
    %v78 = vld [vmem:[#allocation5 + $0x58] sm:$0xf]
    %v79 = vld [vmem:[#allocation5 + $0x5c] sm:$0xf]
    %v80 = vld [vmem:[#allocation5 + $0x60] sm:$0xf]
    %v81 = vld [vmem:[#allocation5 + $0x64] sm:$0xf]
    %v82 = vld [vmem:[#allocation5 + $0x68] sm:$0xf]
    %v83 = vld [vmem:[#allocation5 + $0x6c] sm:$0xf]
    %v84 = vld [vmem:[#allocation5 + $0x70] sm:$0xf]
    %v85 = vld [vmem:[#allocation5 + $0x74] sm:$0xf]
    %v86 = vld [vmem:[#allocation5 + $0x78] sm:$0xf]
    %v87 = vld [vmem:[#allocation5 + $0x7c] sm:$0xf]
    %v88 = vld [vmem:[%s2] sm:$0x1]
    %v90 = vlaneseq
    %v91 = vshrl.u32 %v90, 7
    %v92 = vsub.s32 0, %v91
    %v93 = vrot.slane %v88, %v92
    %v127 = vunpack.c.l.b16 %v56
    %v128 = vunpack.c.l.b16 %v57
    %v129 = vunpack.c.l.b16 %v58
    %v130 = vunpack.c.l.b16 %v59
    %v131 = vunpack.c.l.b16 %v60
    %v132 = vunpack.c.l.b16 %v61
    %v133 = vunpack.c.l.b16 %v62
    %v134 = vunpack.c.l.b16 %v63
    %v135 = vunpack.c.l.b16 %v64
    %v136 = vunpack.c.l.b16 %v65
    %v137 = vunpack.c.l.b16 %v66
    %v138 = vunpack.c.l.b16 %v67
    %v139 = vunpack.c.l.b16 %v68
    %v140 = vunpack.c.l.b16 %v69
    %v141 = vunpack.c.l.b16 %v70
    %v142 = vunpack.c.l.b16 %v71
    %v143 = vunpack.c.l.b16 %v72
    %v144 = vunpack.c.l.b16 %v73
    %v145 = vunpack.c.l.b16 %v74
    %v146 = vunpack.c.l.b16 %v75
    %v147 = vunpack.c.l.b16 %v76
    %v148 = vunpack.c.l.b16 %v77
    %v149 = vunpack.c.l.b16 %v78
    %v150 = vunpack.c.l.b16 %v79
    %v151 = vunpack.c.l.b16 %v80
    %v152 = vunpack.c.l.b16 %v81
    %v153 = vunpack.c.l.b16 %v82
    %v154 = vunpack.c.l.b16 %v83
    %v155 = vunpack.c.l.b16 %v84
    %v156 = vunpack.c.l.b16 %v85
    %v157 = vunpack.c.l.b16 %v86
    %v158 = vunpack.c.l.b16 %v87
    %v159 = vpack.c.b16 %v128, %v127
    %v160 = vpack.c.b16 %v130, %v129
    %v161 = vpack.c.b16 %v132, %v131
    %v162 = vpack.c.b16 %v134, %v133
    %v163 = vpack.c.b16 %v136, %v135
    %v164 = vpack.c.b16 %v138, %v137
    %v165 = vpack.c.b16 %v140, %v139
    %v166 = vpack.c.b16 %v142, %v141
    %v167 = vpack.c.b16 %v144, %v143
    %v168 = vpack.c.b16 %v146, %v145
    %v169 = vpack.c.b16 %v148, %v147
    %v170 = vpack.c.b16 %v150, %v149
    %v171 = vpack.c.b16 %v152, %v151
    %v172 = vpack.c.b16 %v154, %v153
    %v173 = vpack.c.b16 %v156, %v155
    %v174 = vpack.c.b16 %v158, %v157
    %191 = vmatprep.subr.bf16.mxu0 0
    %192 = vmatpush1.bf16.msra.mxu0 %v159
    %193 = vmatprep.subr.bf16.mxu0 0
    %194 = vmatpush1.bf16.msra.mxu0 %v160
    %195 = vmatprep.subr.bf16.mxu0 0
    %196 = vmatpush1.bf16.msra.mxu0 %v161
    %197 = vmatprep.subr.bf16.mxu0 0
    %198 = vmatpush1.bf16.msra.mxu0 %v162
    %199 = vmatprep.subr.bf16.mxu0 0
    %200 = vmatpush1.bf16.msra.mxu0 %v163
    %201 = vmatprep.subr.bf16.mxu0 0
    %202 = vmatpush1.bf16.msra.mxu0 %v164
    %203 = vmatprep.subr.bf16.mxu0 0
    %204 = vmatpush1.bf16.msra.mxu0 %v165
    %205 = vmatprep.subr.bf16.mxu0 0
    %206 = vmatpush1.bf16.msra.mxu0 %v166
    %207 = vmatprep.subr.bf16.mxu0 0
    %208 = vmatpush1.bf16.msra.mxu0 %v167
    %209 = vmatprep.subr.bf16.mxu0 0
    %210 = vmatpush1.bf16.msra.mxu0 %v168
    %211 = vmatprep.subr.bf16.mxu0 0
    %212 = vmatpush1.bf16.msra.mxu0 %v169
    %213 = vmatprep.subr.bf16.mxu0 0
    %214 = vmatpush1.bf16.msra.mxu0 %v170
    %215 = vmatprep.subr.bf16.mxu0 0
    %216 = vmatpush1.bf16.msra.mxu0 %v171
    %217 = vmatprep.subr.bf16.mxu0 0
    %218 = vmatpush1.bf16.msra.mxu0 %v172
    %219 = vmatprep.subr.bf16.mxu0 0
    %220 = vmatpush1.bf16.msra.mxu0 %v173
    %221 = vmatprep.subr.bf16.mxu0 0
    %222 = vmatpush1.bf16.msra.mxu0 %v174
    %223 = vmatprep.mubr.bf16.mxu0 %v53
    %224 = vmatmul.mubr.bf16.gmra.mrb[0].mxu0 %v52
    %v225 = vpop.f32.mrb[0].mxu0
    %v226 = vadd.f32 %v93, %v225
    %v227 = vpop.f32.mrb[0].mxu0
    %v228 = vpop.f32.mrb[0].mxu0
    %v229 = vadd.f32 %v93, %v228
    %v230 = vpop.f32.mrb[0].mxu0
    %231 = vmatprep.mubr.bf16.mxu0 %v55
    %232 = vmatmul.mubr.bf16.gmra.mrb[0].mxu0 %v54
    %v233 = vpop.f32.mrb[0].mxu0
    %v234 = vadd.f32 %v93, %v233
    %v235 = vpop.f32.mrb[0].mxu0
    %v236 = vpop.f32.mrb[0].mxu0
    %v237 = vadd.f32 %v93, %v236
    %v238 = vpop.f32.mrb[0].mxu0
    %239 = vdwg.mxu0
    %v240 = vpack.c.bf16 %v229, %v226
    %v241 = vpack.c.bf16 %v237, %v234
    %v244 = vunpack.c.l.b16 %v240
    %v245 = vunpack.c.h.b16 %v240
    %v246 = vunpack.c.l.b16 %v241
    %v247 = vunpack.c.h.b16 %v241
    %v248 = vpack.c.b16 %v244, %v244
    %v249 = vpack.c.b16 %v245, %v245
    %v250 = vpack.c.b16 %v246, %v246
    %v251 = vpack.c.b16 %v247, %v247
    %256 = vst [vmem:[#allocation7] sm:$0xf] %v248
    %257 = vst [vmem:[#allocation7 + $0x4] sm:$0xf] %v249
    %258 = vst [vmem:[#allocation7 + $0x8] sm:$0xf] %v250
    %259 = vst [vmem:[#allocation7 + $0xc] sm:$0xf] %v251
    // Predicated region
    $region22: #{tpu_custom_call.1} parent=1 // pred_check
      _
    $region23: #{tpu_custom_call.1} parent=1 // pred_check_branch
      %261 = sbr.rel (0) target = $region25
    $region24: #{tpu_custom_call.1} parent=1 // pred_region
      %s263 = ssub.s32 256, 256
      %264 = vsyncadd [#allocation4], %s263
      %s265 = sshll.u32 [#allocation7], 4
      %s266 = int_to_ptr.vmem [resolvable:$true] %s265
      %271 = dma.vmem_to_hbm [thread:$0]  %s266, 256, %s3, [#allocation4], 64, 64, 4
    $region25: #{tpu_custom_call.1} parent=1 // pred_fallthru
      _
    // Predicated region
    $region26: #{tpu_custom_call.1} parent=1 // pred_check
      _
    $region27: #{tpu_custom_call.1} parent=1 // pred_check_branch
      %273 = sbr.rel (0) target = $region29
    $region28: #{tpu_custom_call.1} parent=1 // pred_region
      %274 = dma.done [#allocation4], 256
    $region29: #{tpu_custom_call.1} parent=1 // pred_fallthru
      _
    %275 = vsyncpa [#allocation3], 1
    %276 = vsyncpa [#allocation6], 1
    %277 = vsyncpa [#allocation4], 1

</llo_original>
